<compile_context>
chip_gen: v5e
topology: v5e:2x2
jax: 0.10.0
libtpu: 0.0.40
codegen_flags: <defaults>
</compile_context>

<pallas_src>
import functools

import jax
import jax.numpy as jnp
from jax.experimental import pallas as pl
from jax.experimental.pallas import tpu as pltpu


def _chan_layernorm_kernel(x_ref, g_ref, b_ref, o_ref, *, eps, inv_c):
    # x_ref/o_ref: (1, C, Sb, 128) or (1, C, T);  g_ref/b_ref: (1, C, 1, 1) or (1, C, 1).
    x = x_ref[...].astype(jnp.float32)
    mean = jnp.sum(x, axis=1, keepdims=True) * inv_c
    xc = x - mean
    var = jnp.sum(xc * xc, axis=1, keepdims=True) * inv_c      # biased (unbiased=False)
    inv = 1.0 / (jnp.sqrt(var) + eps)                           # tiny per-column tensor
    g = g_ref[...].astype(jnp.float32)
    b = b_ref[...].astype(jnp.float32)
    o_ref[...] = (xc * inv * g + b).astype(o_ref.dtype)


def _round_up(a, m):
    return -(-a // m) * m


def _tpu_budget():
    """Best-effort (vmem_limit_bytes, #TensorCores sharing the 'parallel' grid)."""
    phys_vmem = None
    try:
        info = pltpu.get_tpu_info()
        for name in ("vmem_capacity_bytes", "vmem_size_bytes", "vmem_bytes"):
            v = getattr(info, name, None)
            if isinstance(v, int) and v > 0:
                phys_vmem = v
                break
    except Exception:
        pass
    kind = ""
    try:
        kind = jax.devices()[0].device_kind.lower()
    except Exception:
        pass
    n_cores = 2 if any(t in kind for t in ("v7", "v4", "v5p")) else 1
    if phys_vmem is None:
        if "v7" in kind:
            phys_vmem = 64 << 20
        elif "v2" in kind or "v3" in kind:
            phys_vmem = 16 << 20
        else:
            phys_vmem = 128 << 20                    # v5e / v6e / unknown-recent
    vmem_limit = max(16 << 20, min(96 << 20, phys_vmem - (16 << 20)))
    return vmem_limit, n_cores


def _plan_cols_per_block(n, c, cols, itemsize, pack, vmem_limit, n_cores, four_d):
    """How many 128-lane spatial columns go into one (n, spatial) grid block."""
    gran = pack if four_d else 1                     # 4-D: Sb is a sublane dim
    c_vmem = c if four_d else _round_up(c, pack)     # 3-D layout sublane-pads C
    # Per 128-lane column: double-buffered in+out blocks plus ~2 f32 compute temps.
    per_col = c_vmem * 128 * (4 * itemsize + 8)
    # Grid-invariant g/b blocks (double-buffered, tile-padded f32).
    gb_bytes = 2 * 2 * (c * 8 * 128 * 4 if four_d else _round_up(c, 8) * 128 * 4)
    budget = int(0.70 * vmem_limit) - gb_bytes
    max_cols = max(1, budget // per_col)
    if cols <= max_cols:
        cpb = cols                                   # one full-extent spatial block
    else:
        cpb = max(gran, (max_cols // gran) * gran)
    # Keep >= n_cores "parallel" grid points on dual-TensorCore parts.
    if n_cores > 1 and n * (-(-cols // cpb)) < n_cores and cols > gran:
        cpb = min(cpb, max(gran, (cols // n_cores // gran) * gran))
    return cpb
    # TODO(synk): for very large C (>~1024) add a channel-chunk grid axis that
    # accumulates sum / sum-of-squares into per-column scratch (P3 init/finalize)
    # instead of letting cpb collapse to the sublane floor and shortening DMA runs.


def chan_layer_norm(x_nchw, g, b, *, eps=1e-5):
    """x_nchw: (N, C, H, W); g, b reshapeable to (1, C, 1, 1). Returns (N, C, H, W)."""
    N, C, H, W = x_nchw.shape
    HW = H * W
    dtype = x_nchw.dtype
    itemsize = jnp.dtype(dtype).itemsize
    pack = max(8, 32 // itemsize)                    # sublane packing: 8 f32, 16 bf16
    vmem_limit, n_cores = _tpu_budget()

    four_d = (HW % 128 == 0)
    cols = pl.cdiv(HW, 128)
    cpb = _plan_cols_per_block(N, C, cols, itemsize, pack, vmem_limit, n_cores, four_d)

    kernel = functools.partial(_chan_layernorm_kernel, eps=float(eps), inv_c=1.0 / float(C))
    cost = pl.CostEstimate(
        flops=8 * N * C * HW,
        transcendentals=2 * N * HW,
        bytes_accessed=2 * N * C * HW * itemsize + 2 * C * 4,
    )
    cparams = pltpu.CompilerParams(
        dimension_semantics=("parallel", "parallel"),
        vmem_limit_bytes=int(vmem_limit),
    )

    if four_d:
        # Lane-dense layout: (N, C, S, 128); channel reduction on a non-vreg axis.
        S = HW // 128
        sb = min(cpb, S)                             # sb % pack == 0 unless sb == S
        x4 = x_nchw.reshape(N, C, S, 128)            # contiguous reshape: no HBM pass
        g4 = jnp.asarray(g).reshape(1, C, 1, 1)
        b4 = jnp.asarray(b).reshape(1, C, 1, 1)
        out = pl.pallas_call(
            kernel,
            out_shape=jax.ShapeDtypeStruct((N, C, S, 128), dtype),
            grid_spec=pltpu.PrefetchScalarGridSpec(
                num_scalar_prefetch=0,
                grid=(N, pl.cdiv(S, sb)),
                in_specs=[
                    pl.BlockSpec((1, C, sb, 128), lambda n, s: (n, 0, s, 0)),
                    pl.BlockSpec((1, C, 1, 1), lambda n, s: (0, 0, 0, 0)),
                    pl.BlockSpec((1, C, 1, 1), lambda n, s: (0, 0, 0, 0)),
                ],
                out_specs=pl.BlockSpec((1, C, sb, 128), lambda n, s: (n, 0, s, 0)),
            ),
            compiler_params=cparams,
            cost_estimate=cost,
        )(x4, g4, b4)
        return out.reshape(N, C, H, W)

    # Ragged spatial (HW % 128 != 0): 3-D layout; Pallas masks the partial last block,
    # so no wrapper-side pad / slice (each would be another full HBM pass).
    T = HW if cpb >= cols else cpb * 128
    x3 = x_nchw.reshape(N, C, HW)
    g3 = jnp.asarray(g).reshape(1, C, 1)
    b3 = jnp.asarray(b).reshape(1, C, 1)
    out = pl.pallas_call(
        kernel,
        out_shape=jax.ShapeDtypeStruct((N, C, HW), dtype),
        grid_spec=pltpu.PrefetchScalarGridSpec(
            num_scalar_prefetch=0,
            grid=(N, pl.cdiv(HW, T)),
            in_specs=[
                pl.BlockSpec((1, C, T), lambda n, s: (n, 0, s)),
                pl.BlockSpec((1, C, 1), lambda n, s: (0, 0, 0)),
                pl.BlockSpec((1, C, 1), lambda n, s: (0, 0, 0)),
            ],
            out_specs=pl.BlockSpec((1, C, T), lambda n, s: (n, 0, s)),
        ),
        compiler_params=cparams,
        cost_estimate=cost,
    )(x3, g3, b3)
    return out.reshape(N, C, H, W)


def _reference(x, g, b, eps=1e-5):
    mean = jnp.mean(x, axis=1, keepdims=True)
    var = jnp.mean((x - mean) ** 2, axis=1, keepdims=True)
    return (x - mean) / (jnp.sqrt(var) + eps) * g + b


if __name__ == "__main__":
    key = jax.random.PRNGKey(0)
    N, C = 2, 4
    # nn.Parameter(torch.ones(1, dim, 1, 1)) / torch.zeros(1, dim, 1, 1)
    g = jnp.ones((1, C, 1, 1), dtype=jnp.float32)
    b = jnp.zeros((1, C, 1, 1), dtype=jnp.float32)

    ok = True
    # 16x16 exercises the lane-dense 4-D path; 14x14 exercises the ragged 3-D path.
    for (H, W), sk in zip(((16, 16), (14, 14)), jax.random.split(key, 2)):
        x = jax.random.normal(sk, (N, C, H, W), dtype=jnp.float32) * 2.0 + 0.5
        out = jax.block_until_ready(chan_layer_norm(x, g, b, eps=1e-5))
        ref = _reference(x, g, b, eps=1e-5)
        ok = ok and (out.shape == x.shape)
        ok = ok and bool(jnp.allclose(out, ref, atol=2e-5, rtol=2e-5))
    assert ok, "mismatch vs reference"
    print("KERNEL_OK")
</pallas_src>

<mosaic_0001>
module attributes {stable_mosaic.version = 11 : i64} {
  func.func @_chan_layernorm_kernel(%arg0: i32, %arg1: i32, %arg2: memref<1x4x2x128xf32, #tpu.memory_space<vmem>>, %arg3: memref<1x4x1x1xf32, #tpu.memory_space<vmem>>, %arg4: memref<1x4x1x1xf32, #tpu.memory_space<vmem>>, %arg5: memref<1x4x2x128xf32, #tpu.memory_space<vmem>>) attributes {dimension_semantics = [#tpu.dimension_semantics<parallel>, #tpu.dimension_semantics<parallel>], iteration_bounds = array<i64: 2, 1>, scalar_prefetch = 0 : i64, scratch_operands = 0 : i64, tpu.core_type = #tpu.core_type<tc>, window_params = [{transform_indices = @transform_0, window_bounds = array<i64: 1, 4, 2, 128>}, {pipeline_mode = #tpu.pipeline_mode<synchronous>, transform_indices = @transform_1, window_bounds = array<i64: 1, 4, 1, 1>}, {pipeline_mode = #tpu.pipeline_mode<synchronous>, transform_indices = @transform_2, window_bounds = array<i64: 1, 4, 1, 1>}, {transform_indices = @transform_3, window_bounds = array<i64: 1, 4, 2, 128>}]} {
    %c0 = arith.constant 0 : index
    %c0_0 = arith.constant 0 : index
    %c0_1 = arith.constant 0 : index
    %c0_2 = arith.constant 0 : index
    %0 = vector.load %arg2[%c0, %c0_0, %c0_1, %c0_2] : memref<1x4x2x128xf32, #tpu.memory_space<vmem>>, vector<1x4x2x128xf32>
    %cst = arith.constant dense<0.000000e+00> : vector<1x2x128xf32>
    %1 = vector.multi_reduction <add>, %0, %cst [1] : vector<1x4x2x128xf32> to vector<1x2x128xf32>
    %2 = vector.shape_cast %1 : vector<1x2x128xf32> to vector<1x1x2x128xf32>
    %cst_3 = arith.constant 2.500000e-01 : f32
    %3 = vector.broadcast %cst_3 : f32 to vector<1x1x2x128xf32>
    %4 = arith.mulf %2, %3 : vector<1x1x2x128xf32>
    %5 = vector.broadcast %4 : vector<1x1x2x128xf32> to vector<1x4x2x128xf32>
    %6 = arith.subf %0, %5 : vector<1x4x2x128xf32>
    %7 = arith.mulf %6, %6 : vector<1x4x2x128xf32>
    %cst_4 = arith.constant dense<0.000000e+00> : vector<1x2x128xf32>
    %8 = vector.multi_reduction <add>, %7, %cst_4 [1] : vector<1x4x2x128xf32> to vector<1x2x128xf32>
    %9 = vector.shape_cast %8 : vector<1x2x128xf32> to vector<1x1x2x128xf32>
    %cst_5 = arith.constant 2.500000e-01 : f32
    %10 = vector.broadcast %cst_5 : f32 to vector<1x1x2x128xf32>
    %11 = arith.mulf %9, %10 : vector<1x1x2x128xf32>
    %12 = math.sqrt %11 : vector<1x1x2x128xf32>
    %cst_6 = arith.constant 9.99999974E-6 : f32
    %13 = vector.broadcast %cst_6 : f32 to vector<1x1x2x128xf32>
    %14 = arith.addf %12, %13 : vector<1x1x2x128xf32>
    %cst_7 = arith.constant 1.000000e+00 : f32
    %15 = vector.broadcast %cst_7 : f32 to vector<1x1x2x128xf32>
    %16 = arith.divf %15, %14 : vector<1x1x2x128xf32>
    %c0_8 = arith.constant 0 : index
    %c0_9 = arith.constant 0 : index
    %c0_10 = arith.constant 0 : index
    %c0_11 = arith.constant 0 : index
    %17 = vector.load %arg3[%c0_8, %c0_9, %c0_10, %c0_11] : memref<1x4x1x1xf32, #tpu.memory_space<vmem>>, vector<1x4x1x1xf32>
    %c0_12 = arith.constant 0 : index
    %c0_13 = arith.constant 0 : index
    %c0_14 = arith.constant 0 : index
    %c0_15 = arith.constant 0 : index
    %18 = vector.load %arg4[%c0_12, %c0_13, %c0_14, %c0_15] : memref<1x4x1x1xf32, #tpu.memory_space<vmem>>, vector<1x4x1x1xf32>
    %19 = vector.broadcast %16 : vector<1x1x2x128xf32> to vector<1x4x2x128xf32>
    %20 = arith.mulf %6, %19 : vector<1x4x2x128xf32>
    %21 = vector.broadcast %17 : vector<1x4x1x1xf32> to vector<1x4x2x128xf32>
    %22 = arith.mulf %20, %21 : vector<1x4x2x128xf32>
    %23 = vector.broadcast %18 : vector<1x4x1x1xf32> to vector<1x4x2x128xf32>
    %24 = arith.addf %22, %23 : vector<1x4x2x128xf32>
    %c0_16 = arith.constant 0 : index
    %c0_17 = arith.constant 0 : index
    %c0_18 = arith.constant 0 : index
    %c0_19 = arith.constant 0 : index
    %25 = vector.load %arg5[%c0_16, %c0_17, %c0_18, %c0_19] : memref<1x4x2x128xf32, #tpu.memory_space<vmem>>, vector<1x4x2x128xf32>
    tpu.vector_store %arg5[%c0_16, %c0_17, %c0_18, %c0_19], %24 {strides = array<i32>} : memref<1x4x2x128xf32, #tpu.memory_space<vmem>>, vector<1x4x2x128xf32>,
    return
  }
  func.func @transform_0(%arg0: i32, %arg1: i32) -> (i32, i32, i32, i32) {
    %c0_i32 = arith.constant 0 : i32
    %c0_i32_0 = arith.constant 0 : i32
    %c0_i32_1 = arith.constant 0 : i32
    return %arg0, %c0_i32, %arg1, %c0_i32_0 : i32, i32, i32, i32
  }
  func.func @transform_1(%arg0: i32, %arg1: i32) -> (i32, i32, i32, i32) {
    %c0_i32 = arith.constant 0 : i32
    %c0_i32_0 = arith.constant 0 : i32
    %c0_i32_1 = arith.constant 0 : i32
    %c0_i32_2 = arith.constant 0 : i32
    %c0_i32_3 = arith.constant 0 : i32
    return %c0_i32, %c0_i32_0, %c0_i32_1, %c0_i32_2 : i32, i32, i32, i32
  }
  func.func @transform_2(%arg0: i32, %arg1: i32) -> (i32, i32, i32, i32) {
    %c0_i32 = arith.constant 0 : i32
    %c0_i32_0 = arith.constant 0 : i32
    %c0_i32_1 = arith.constant 0 : i32
    %c0_i32_2 = arith.constant 0 : i32
    %c0_i32_3 = arith.constant 0 : i32
    return %c0_i32, %c0_i32_0, %c0_i32_1, %c0_i32_2 : i32, i32, i32, i32
  }
  func.func @transform_3(%arg0: i32, %arg1: i32) -> (i32, i32, i32, i32) {
    %c0_i32 = arith.constant 0 : i32
    %c0_i32_0 = arith.constant 0 : i32
    %c0_i32_1 = arith.constant 0 : i32
    return %arg0, %c0_i32, %arg1, %c0_i32_0 : i32, i32, i32, i32
  }
}

</mosaic_0001>

<llo_original>
// kernel: tpu_custom_call.1
$region0: #{tpu_custom_call.1}
  #allocation0 [shape = 'u32[]', space=smem, size = 0x4, offset = 0x4, fixed_abs, tag = 'smem constant byte address 0x4 - core index']
  #allocation1 [shape = 'u32[72,128]{1,0:T(1,128)}', space=vmem, size = 0x9000, scoped, tag = 'internal scratch']
  %s0 = inlined_call_operand.hbm [shape: f32[2,4,2,128], index: 0, kind: input, shape index: {}]
  %s1 = inlined_call_operand.vmem [shape: f32[1,4,1,1], index: 1, kind: input, shape index: {}]
  %s2 = inlined_call_operand.vmem [shape: f32[1,4,1,1], index: 2, kind: input, shape index: {}]
  %s3 = inlined_call_operand.hbm [shape: f32[2,4,2,128], index: 3, kind: output, shape index: {}]
  %s4 = sld [smem:[#allocation0]]
  $region49: #{tpu_custom_call.1} parent=0
    _
  %s6 = ssub.s32 1, %s4
  %s7 = scalar_select 0, %s6, %s4
  $region1: #{tpu_custom_call.1} parent=0
    #allocation2 [shape = 'u8[8192]{0}', space=vmem, size = 0x2000, scoped, tag = 'input window, operand 0']
    #allocation3 [shape = 's32[2]{0}', space=sflag, size = 0x8, scoped, tag = 'scoped memory for tpu_custom_call.1']
    #allocation4 [shape = 's32[2]{0}', space=sflag, size = 0x8, scoped, tag = 'scoped memory for tpu_custom_call.1']
    #allocation5 [shape = 'u8[8192]{0}', space=vmem, size = 0x2000, scoped, tag = 'output window, operand 0']
    %8 = vsyncpa [#allocation3], 0
    %s9 = scalar_lea.sflag [#allocation3], 1
    %10 = vsyncpa %s9, 0
    %11 = vsyncpa [#allocation4], 0
    %s12 = scalar_lea.sflag [#allocation4], 1
    %13 = vsyncpa %s12, 0
    loop: start=0, step=1, limit=4
    $region2: #{tpu_custom_call.1} parent=1 // loop_pre_header
      _
    $region3: #{tpu_custom_call.1} parent=1 // loop_header
      %s15 = sphi 0, %s19
      %p16 = scmp.ge.s32.totalorder %s15, 4
      %s22 = sphi 0, %s34
      %s23 = sphi 0, %s30
      %s24 = sphi 0, %s22
      %s25 = sphi 0, %s23
      %s26 = sphi 0, %s24
      %s27 = sphi 0, %s25
      %s39 = sphi 0, %s41
      %s42 = sphi 0, %s39
      %s43 = sphi 0, %s42
      %s59 = sphi 0, %s43
      %s63 = sphi 0, %s63
      %s65 = sphi 0, %s63
      %s66 = sphi 0, %s65
      %s80 = sphi 0, %s66
      %s84 = sphi 0, %s84
      %s86 = sphi 0, %s84
      %s87 = sphi 0, %s86
      %s101 = sphi 0, %s87
      %s109 = sphi 0, %s111
      %s112 = sphi 0, %s109
      %s113 = sphi 0, %s112
      %s129 = sphi 0, %s113
    $region4: #{tpu_custom_call.1} parent=1 // loop_header_branch
      %18 = sbr.rel (%p16) target = $region8
    $region5: #{tpu_custom_call.1} parent=1 // loop_body
      %s20 = ssub.s32 %s15, 1
      %s21 = ssub.s32 %s15, 2
      %s28 = sadd.s32 1, %s23
      %p29 = scmp.ge.s32.totalorder %s28, 1
      %s30 = scalar_select %p29, 0, %s28
      %s31 = sadd.s32 1, %s22
      %s32 = scalar_select %p29, %s31, %s22
      %p33 = scmp.ge.s32.totalorder %s32, 2
      %s34 = scalar_select %p33, 0, %s32
      %s35 = ssub.s32 %s22, %s34
      %s36 = ssub.s32 %s23, %s30
      %s37 = sor.u32 %s35, %s36
      %p38 = scmp.eq.s32.totalorder %s37, 0
      %s40 = sadd.s32 %s39, 1
      %s41 = scalar_select %p38, %s39, %s40
      %p44 = pneg %p38
      %p45 = scmp.eq.s32.totalorder %s15, 1
      %p46 = por %p44, %p45
      %p47 = scmp.ne.s32.totalorder %s39, %s42
      %p48 = scmp.eq.s32.totalorder %s15, 0
      %p49 = por %p47, %p48
      %p50 = scmp.ne.s32.totalorder %s39, %s42
      %p51 = scmp.eq.s32.totalorder %s20, 1
      %p52 = por %p50, %p51
      %p53 = scmp.ne.s32.totalorder %s42, %s43
      %p54 = scmp.eq.s32.totalorder %s20, 0
      %p55 = por %p53, %p54
      %p56 = scmp.ne.s32.totalorder %s42, %s43
      %p57 = scmp.eq.s32.totalorder %s21, 1
      %p58 = por %p56, %p57
      %p60 = scmp.ne.s32.totalorder %s43, %s59
      %p61 = scmp.eq.s32.totalorder %s21, 0
      %p62 = por %p60, %p61
      %s64 = sadd.s32 %s63, 1
      %p67 = scmp.eq.s32.totalorder %s15, 1
      %p68 = scmp.ne.s32.totalorder %s63, %s65
      %p69 = scmp.eq.s32.totalorder %s15, 0
      %p70 = por %p68, %p69
      %p71 = scmp.ne.s32.totalorder %s63, %s65
      %p72 = scmp.eq.s32.totalorder %s20, 1
      %p73 = por %p71, %p72
      %p74 = scmp.ne.s32.totalorder %s65, %s66
      %p75 = scmp.eq.s32.totalorder %s20, 0
      %p76 = por %p74, %p75
      %p77 = scmp.ne.s32.totalorder %s65, %s66
      %p78 = scmp.eq.s32.totalorder %s21, 1
      %p79 = por %p77, %p78
      %p81 = scmp.ne.s32.totalorder %s66, %s80
      %p82 = scmp.eq.s32.totalorder %s21, 0
      %p83 = por %p81, %p82
      %s85 = sadd.s32 %s84, 1
      %p88 = scmp.eq.s32.totalorder %s15, 1
      %p89 = scmp.ne.s32.totalorder %s84, %s86
      %p90 = scmp.eq.s32.totalorder %s15, 0
      %p91 = por %p89, %p90
      %p92 = scmp.ne.s32.totalorder %s84, %s86
      %p93 = scmp.eq.s32.totalorder %s20, 1
      %p94 = por %p92, %p93
      %p95 = scmp.ne.s32.totalorder %s86, %s87
      %p96 = scmp.eq.s32.totalorder %s20, 0
      %p97 = por %p95, %p96
      %p98 = scmp.ne.s32.totalorder %s86, %s87
      %p99 = scmp.eq.s32.totalorder %s21, 1
      %p100 = por %p98, %p99
      %p102 = scmp.ne.s32.totalorder %s87, %s101
      %p103 = scmp.eq.s32.totalorder %s21, 0
      %p104 = por %p102, %p103
      %s105 = ssub.s32 %s22, %s34
      %s106 = ssub.s32 %s23, %s30
      %s107 = sor.u32 %s105, %s106
      %p108 = scmp.eq.s32.totalorder %s107, 0
      %s110 = sadd.s32 %s109, 1
      %s111 = scalar_select %p108, %s109, %s110
      %p114 = pneg %p108
      %p115 = scmp.eq.s32.totalorder %s15, 1
      %p116 = por %p114, %p115
      %p117 = scmp.ne.s32.totalorder %s109, %s112
      %p118 = scmp.eq.s32.totalorder %s15, 0
      %p119 = por %p117, %p118
      %p120 = scmp.ne.s32.totalorder %s109, %s112
      %p121 = scmp.eq.s32.totalorder %s20, 1
      %p122 = por %p120, %p121
      %p123 = scmp.ne.s32.totalorder %s112, %s113
      %p124 = scmp.eq.s32.totalorder %s20, 0
      %p125 = por %p123, %p124
      %p126 = scmp.ne.s32.totalorder %s112, %s113
      %p127 = scmp.eq.s32.totalorder %s21, 1
      %p128 = por %p126, %p127
      %p130 = scmp.ne.s32.totalorder %s113, %s129
      %p131 = scmp.eq.s32.totalorder %s21, 0
      %p132 = por %p130, %p131
      %p133 = scmp.le.s32.totalorder 1, %s15
      %p134 = scmp.lt.s32.totalorder %s15, 3
      %p135 = pnand %p133, %p134
      %p136 = pneg %p135
      // Predicated region
      $region9: #{tpu_custom_call.1} parent=5 // pred_check
        _
      $region10: #{tpu_custom_call.1} parent=5 // pred_check_branch
        %138 = sbr.rel (%p135) target = $region12
      $region11: #{tpu_custom_call.1} parent=5 // pred_region
        %s139 = ssub.s32 %s15, 1
        // Predicated region
        $region13: #{tpu_custom_call.1} parent=11 // pred_check
          %p140 = pneg %p76
        $region14: #{tpu_custom_call.1} parent=11 // pred_check_branch
          %142 = sbr.rel (%p140) target = $region16
        $region15: #{tpu_custom_call.1} parent=11 // pred_region
          _
        $region16: #{tpu_custom_call.1} parent=11 // pred_fallthru
          _
        // Predicated region
        $region17: #{tpu_custom_call.1} parent=11 // pred_check
          %p143 = pneg %p97
        $region18: #{tpu_custom_call.1} parent=11 // pred_check_branch
          %145 = sbr.rel (%p143) target = $region20
        $region19: #{tpu_custom_call.1} parent=11 // pred_region
          _
        $region20: #{tpu_custom_call.1} parent=11 // pred_fallthru
          _
      $region12: #{tpu_custom_call.1} parent=5 // pred_fallthru
        _
      %p146 = scmp.lt.s32.totalorder %s15, 2
      // Predicated region
      $region21: #{tpu_custom_call.1} parent=5 // pred_check
        %p147 = pneg %p146
      $region22: #{tpu_custom_call.1} parent=5 // pred_check_branch
        %149 = sbr.rel (%p147) target = $region24
      $region23: #{tpu_custom_call.1} parent=5 // pred_region
        // Predicated region
        $region25: #{tpu_custom_call.1} parent=23 // pred_check
          %p150 = pneg %p49
        $region26: #{tpu_custom_call.1} parent=23 // pred_check_branch
          %152 = sbr.rel (%p150) target = $region28
        $region27: #{tpu_custom_call.1} parent=23 // pred_region
          %s153 = sand.u32 %s39, 1
          %s154 = scalar_lea.sflag [#allocation3], %s153
          %s155 = sand.u32 %s39, 1
          %s156 = smul.addr %s155, 8
          %s157 = scalar_lea.vmem [#allocation2], %s156
          %159 = vsyncadd %s154, 0
          %s160 = smul.addr %s22, 4
          %s161 = sadd.s32 %s23, %s160
          %s162 = smul.addr %s161, 2
          %s163 = scalar_lea.hbm %s0, %s162
          %s164 = sshll.u32 %s163, 4
          %s165 = int_to_ptr.hbm [resolvable:$true] %s164
          %s166 = sshll.u32 %s157, 4
          %s167 = int_to_ptr.vmem [resolvable:$true] %s166
          %172 = dma.hbm_to_vmem [thread:$0]  %s165, 128, %s167, %s154, 32, 32, 2
        $region28: #{tpu_custom_call.1} parent=23 // pred_fallthru
          _
      $region24: #{tpu_custom_call.1} parent=5 // pred_fallthru
        _
      %p173 = scmp.le.s32.totalorder 1, %s15
      %p174 = scmp.lt.s32.totalorder %s15, 3
      %p175 = pnand %p173, %p174
      %p176 = pneg %p175
      // Predicated region
      $region29: #{tpu_custom_call.1} parent=5 // pred_check
        _
      $region30: #{tpu_custom_call.1} parent=5 // pred_check_branch
        %178 = sbr.rel (%p175) target = $region32
      $region31: #{tpu_custom_call.1} parent=5 // pred_region
        %s179 = ssub.s32 %s15, 1
        %s180 = sand.u32 %s42, 1
        %s181 = scalar_lea.sflag [#allocation3], %s180
        %s182 = sand.u32 %s42, 1
        %s183 = smul.addr %s182, 8
        %s184 = scalar_lea.vmem [#allocation2], %s183
        // Predicated region
        $region33: #{tpu_custom_call.1} parent=31 // pred_check
          %p185 = pneg %p55
        $region34: #{tpu_custom_call.1} parent=31 // pred_check_branch
          %187 = sbr.rel (%p185) target = $region36
        $region35: #{tpu_custom_call.1} parent=31 // pred_region
          %189 = dma.done %s181, 128
        $region36: #{tpu_custom_call.1} parent=31 // pred_fallthru
          _
        %s190 = sand.u32 %s42, 1
        %s191 = scalar_lea.sflag [#allocation3], %s190
        %s192 = sand.u32 %s42, 1
        %s193 = smul.addr %s192, 8
        %s194 = scalar_lea.vmem [#allocation2], %s193
        %p195 = pneg %p55
        %p196 = pneg %p52
        %p197 = pneg %p76
        %p198 = pneg %p73
        %p199 = pneg %p97
        %p200 = pneg %p94
        %p201 = pneg %p125
        %p202 = pneg %p122
        %s203 = sand.u32 %s112, 1
        %s204 = scalar_lea.sflag [#allocation4], %s203
        %s205 = sand.u32 %s112, 1
        %s206 = smul.addr %s205, 8
        %s207 = scalar_lea.vmem [#allocation5], %s206
        %v208 = vld [vmem:[%s184] sm:$0x3]
        %v209 = vld [vmem:[%s184 + $0x2] sm:$0x3]
        %v210 = vld [vmem:[%s184 + $0x4] sm:$0x3]
        %v211 = vld [vmem:[%s184 + $0x6] sm:$0x3]
        %vm212 = vcmask 1041408
        %v213 = vsel %vm212, %v208, 0.0
        %v214 = vsel %vm212, %v209, 0.0
        %v215 = vadd.f32 %v213, %v214
        %v216 = vsel %vm212, %v210, 0.0
        %v217 = vadd.f32 %v215, %v216
        %v218 = vsel %vm212, %v211, 0.0
        %v219 = vadd.f32 %v217, %v218
        %v220 = vmul.f32 %v219, 0.25
        %v221 = vsub.f32 %v208, %v220
        %v222 = vsub.f32 %v209, %v220
        %v223 = vsub.f32 %v210, %v220
        %v224 = vsub.f32 %v211, %v220
        %v225 = vmul.f32 %v221, %v221
        %v226 = vmul.f32 %v222, %v222
        %v227 = vmul.f32 %v223, %v223
        %v228 = vmul.f32 %v224, %v224
        %v229 = vsel %vm212, %v225, 0.0
        %v230 = vsel %vm212, %v226, 0.0
        %v231 = vadd.f32 %v229, %v230
        %v232 = vsel %vm212, %v227, 0.0
        %v233 = vadd.f32 %v231, %v232
        %v234 = vsel %vm212, %v228, 0.0
        %v235 = vadd.f32 %v233, %v234
        %v236 = vmul.f32 %v235, 0.25
        %v237 = vrsqrt.pop %v236
        %v238 = vmul.f32 %v237, %v236
        %v239 = vmul.f32 %v238, %v237
        %v240 = vmul.f32 0.5, %v239
        %v241 = vsub.f32 1.5, %v240
        %v242 = vmul.f32 %v237, %v241
        %v243 = vmul.f32 %v236, %v242
        %vm244 = vcmp.eq.f32.partialorder %v236, inf
        %v245 = vsel %vm244, %v236, %v243
        %vm246 = vcmp.eq.f32.partialorder %v236, 0.0
        %v247 = vand.u32 %v236, 2147483648
        %v248 = vsel %vm246, %v247, %v245
        %v249 = vadd.f32 %v248, 1e-05
        %v250 = vrcp.pop %v249
        %v251 = vmul.f32 %v249, %v250
        %v252 = vsub.f32 1.0, %v251
        %v253 = vmul.f32 %v250, %v252
        %v254 = vadd.f32 %v250, %v253
        %vm255 = vweird.f32 %v249
        %vm256 = vweird.f32 %v250
        %vm257 = vmor %vm255, %vm256
        %v258 = vsel %vm257, %v250, %v254
        %v259 = vand.u32 2147483647, %v249
        %vm260 = vcmp.eq.f32.partialorder %v259, 8.507059e+37
        %v261 = vand.u32 %v249, 2147483648
        %v262 = vor.u32 1.1754944e-38, %v261
        %v263 = vsel %vm260, %v262, %v258
        %v264 = vmul.f32 1.0, %v263
        %v265 = vld [vmem:[%s1] sm:$0x1]
        %v266 = vld [vmem:[%s1 + $0x1] sm:$0x1]
        %v267 = vld [vmem:[%s1 + $0x2] sm:$0x1]
        %v268 = vld [vmem:[%s1 + $0x3] sm:$0x1]
        %v269 = vld [vmem:[%s2] sm:$0x1]
        %v270 = vld [vmem:[%s2 + $0x1] sm:$0x1]
        %v271 = vld [vmem:[%s2 + $0x2] sm:$0x1]
        %v272 = vld [vmem:[%s2 + $0x3] sm:$0x1]
        %v273 = vmul.f32 %v221, %v264
        %v274 = vmul.f32 %v222, %v264
        %v275 = vmul.f32 %v223, %v264
        %v276 = vmul.f32 %v224, %v264
        %v281 = vperm.slane %v265, 0
        %v282 = vperm.slane %v266, 0
        %v283 = vperm.slane %v267, 0
        %v284 = vperm.slane %v268, 0
        %285 = vset.pattern.permute.xlu0 0
        %286 = vperm.xlu0 %285, %v281
        %v287 = vpop.permute.xlu0 %286
        %289 = vset.pattern.permute.xlu0 0
        %290 = vperm.xlu0 %289, %v282
        %v291 = vpop.permute.xlu0 %290
        %293 = vset.pattern.permute.xlu0 0
        %294 = vperm.xlu0 %293, %v283
        %v295 = vpop.permute.xlu0 %294
        %297 = vset.pattern.permute.xlu0 0
        %298 = vperm.xlu0 %297, %v284
        %v299 = vpop.permute.xlu0 %298
        %v301 = vmul.f32 %v273, %v287
        %v302 = vmul.f32 %v274, %v291
        %v303 = vmul.f32 %v275, %v295
        %v304 = vmul.f32 %v276, %v299
        %v309 = vperm.slane %v269, 0
        %v310 = vperm.slane %v270, 0
        %v311 = vperm.slane %v271, 0
        %v312 = vperm.slane %v272, 0
        %313 = vset.pattern.permute.xlu0 0
        %314 = vperm.xlu0 %313, %v309
        %v315 = vpop.permute.xlu0 %314
        %317 = vset.pattern.permute.xlu0 0
        %318 = vperm.xlu0 %317, %v310
        %v319 = vpop.permute.xlu0 %318
        %321 = vset.pattern.permute.xlu0 0
        %322 = vperm.xlu0 %321, %v311
        %v323 = vpop.permute.xlu0 %322
        %325 = vset.pattern.permute.xlu0 0
        %326 = vperm.xlu0 %325, %v312
        %v327 = vpop.permute.xlu0 %326
        %v329 = vadd.f32 %v301, %v315
        %v330 = vadd.f32 %v302, %v319
        %v331 = vadd.f32 %v303, %v323
        %v332 = vadd.f32 %v304, %v327
        %333 = vst [vmem:[%s207] sm:$0x3] %v329
        %334 = vst [vmem:[%s207 + $0x2] sm:$0x3] %v330
        %335 = vst [vmem:[%s207 + $0x4] sm:$0x3] %v331
        %336 = vst [vmem:[%s207 + $0x6] sm:$0x3] %v332
        %s337 = sand.u32 %s112, 1
        %s338 = scalar_lea.sflag [#allocation4], %s337
        %s339 = sand.u32 %s112, 1
        %s340 = smul.addr %s339, 8
        %s341 = scalar_lea.vmem [#allocation5], %s340
        // Predicated region
        $region37: #{tpu_custom_call.1} parent=31 // pred_check
          %p342 = pneg %p122
        $region38: #{tpu_custom_call.1} parent=31 // pred_check_branch
          %344 = sbr.rel (%p342) target = $region40
        $region39: #{tpu_custom_call.1} parent=31 // pred_region
          %346 = vsyncadd %s338, 0
          %s347 = smul.addr %s24, 4
          %s348 = sadd.s32 %s25, %s347
          %s349 = smul.addr %s348, 2
          %s350 = scalar_lea.hbm %s3, %s349
          %s351 = sshll.u32 %s341, 4
          %s352 = int_to_ptr.vmem [resolvable:$true] %s351
          %s353 = sshll.u32 %s350, 4
          %s354 = int_to_ptr.hbm [resolvable:$true] %s353
          %359 = dma.vmem_to_hbm [thread:$0]  %s352, 128, %s354, %s338, 32, 32, 2
        $region40: #{tpu_custom_call.1} parent=31 // pred_fallthru
          _
      $region32: #{tpu_custom_call.1} parent=5 // pred_fallthru
        _
      %p360 = scmp.le.s32.totalorder 2, %s15
      // Predicated region
      $region41: #{tpu_custom_call.1} parent=5 // pred_check
        %p361 = pneg %p360
      $region42: #{tpu_custom_call.1} parent=5 // pred_check_branch
        %363 = sbr.rel (%p361) target = $region44
      $region43: #{tpu_custom_call.1} parent=5 // pred_region
        %s364 = ssub.s32 %s15, 2
        // Predicated region
        $region45: #{tpu_custom_call.1} parent=43 // pred_check
          %p365 = pneg %p128
        $region46: #{tpu_custom_call.1} parent=43 // pred_check_branch
          %367 = sbr.rel (%p365) target = $region48
        $region47: #{tpu_custom_call.1} parent=43 // pred_region
          %s368 = sand.u32 %s113, 1
          %s369 = scalar_lea.sflag [#allocation4], %s368
          %s370 = sand.u32 %s113, 1
          %s371 = smul.addr %s370, 8
          %s372 = scalar_lea.vmem [#allocation5], %s371
          %374 = dma.done %s369, 128
        $region48: #{tpu_custom_call.1} parent=43 // pred_fallthru
          _
      $region44: #{tpu_custom_call.1} parent=5 // pred_fallthru
        _
    $region6: #{tpu_custom_call.1} parent=1 // loop_footer
      %s19 = sadd.s32 1, %s15
    $region7: #{tpu_custom_call.1} parent=1 // loop_footer_branch
      %14 = sbr.rel target = $region3
    $region8: #{tpu_custom_call.1} parent=1 // loop_exit
      _
    %375 = vsyncpa [#allocation3], 1
    %s376 = scalar_lea.sflag [#allocation3], 1
    %377 = vsyncpa %s376, 1
    %378 = vsyncpa [#allocation4], 1
    %s379 = scalar_lea.sflag [#allocation4], 1
    %380 = vsyncpa %s379, 1

</llo_original>
